<compile_context>
chip_gen: v6e
topology: v6e:2x2x1
jax: 0.10.0
libtpu: 0.0.40
codegen_flags: <defaults>
</compile_context>

<pallas_src>
import math
import functools

import jax
import jax.numpy as jnp
from jax import lax
from jax.experimental import pallas as pl
from jax.experimental.pallas import tpu as pltpu


# ------------------------------ fused MHA kernel -----------------------------

def _mha_fused_kernel(x_ref, wqkv_ref, bqkv_ref, wo_ref, bo_ref, o_ref,
                      heads_ref, *, num_heads, d_head, approx_recip):
    # x_ref    : (1, S, H)  one batch element, f32 (cast in-kernel)
    # wqkv_ref : (H, 3H)    packed Wq|Wk|Wv (compute dtype), 1/sqrt(d) folded in Wq
    # bqkv_ref : (1, 3H)    packed bq|bk|bv (f32), 1/sqrt(d) folded in bq
    # wo_ref   : (H, H)     output projection weight (compute dtype)
    # bo_ref   : (1, H)     output projection bias (f32)
    # o_ref    : (1, S, H)  output slab (f32)
    # heads_ref: (S, H)     VMEM scratch holding the concatenated head outputs
    S = x_ref.shape[1]
    H = x_ref.shape[2]
    cdt = wqkv_ref.dtype                     # MXU compute dtype (bf16 or f32)

    # In-kernel cast of x (wrapper no longer does a separate HBM cast pass).
    x = x_ref[0].astype(cdt)                                          # (S, H)

    # Fused Q|K|V projection: single lane-dense MXU matmul, f32 accumulation.
    qkv = jnp.dot(x, wqkv_ref[...],
                  preferred_element_type=jnp.float32) + bqkv_ref[...]  # (S, 3H) f32
    qkv_c = qkv.astype(cdt)                  # one bulk cast for MXU operands
    q = qkv_c[:, :H]
    k = qkv_c[:, H:2 * H]
    v = qkv_c[:, 2 * H:]

    # Per-head attention.  num_heads is a small static int; each head's
    # normalized output is stored straight into its column slice of the VMEM
    # scratch, so per-iteration live ranges end at the store.
    # TODO(synk): for realistic S / num_heads replace this static unroll with a
    # fori_loop / flash-style streamed loop (query tiles, online softmax).
    for h in range(num_heads):
        lo = h * d_head
        q_h = q[:, lo:lo + d_head]                                    # (S, d)
        k_h = k[:, lo:lo + d_head]                                    # (S, d)
        v_h = v[:, lo:lo + d_head]                                    # (S, d)

        # q @ k^T contracting last dims directly (no transposed K tile).
        s = lax.dot_general(q_h, k_h,
                            dimension_numbers=(((1,), (1,)), ((), ())),
                            preferred_element_type=jnp.float32)       # (S, S) f32

        # Softmax with deferred normalization; max/exp/sum stay in f32.
        m = jnp.max(s, axis=-1, keepdims=True)
        p = jnp.exp(s - m)
        l = jnp.sum(p, axis=-1, keepdims=True)                        # (S, 1)

        o_h = jnp.dot(p.astype(cdt), v_h,
                      preferred_element_type=jnp.float32)             # (S, d) f32
        # Normalize the (S, d) PV result, not the (S, S) probabilities.
        # approx=True -> EUP reciprocal (separate VLIW slot) on the bf16 path.
        o_h = o_h * pl.reciprocal(l, approx=approx_recip)
        heads_ref[:, lo:lo + d_head] = o_h.astype(cdt)

    # Single fused output projection over all heads: (S,H) @ (H,H).
    out = jnp.dot(heads_ref[...], wo_ref[...],
                  preferred_element_type=jnp.float32) + bo_ref[...]   # (S, H) f32
    o_ref[0] = out.astype(o_ref.dtype)


# ------------------------- one-time parameter repack -------------------------

def repack_params(params, num_heads, *, compute_dtype=jnp.bfloat16):
    """Hoisted out of the forward call: pack Wq|Wk|Wv, fold 1/sqrt(d), cast."""
    H = params["wo"].shape[0]
    d = H // num_heads
    scale = 1.0 / math.sqrt(d)

    def full_width(w):                       # (nh, H, d) -> (H, nh*d), head-grouped cols
        return jnp.transpose(w, (1, 0, 2)).reshape(H, num_heads * d)

    wq = full_width(params["wq"]) * scale    # fold 1/sqrt(d_head) into Wq
    wk = full_width(params["wk"])
    wv = full_width(params["wv"])
    wqkv = jnp.concatenate([wq, wk, wv], axis=1).astype(compute_dtype)   # (H, 3H)

    bq = params["bq"].reshape(H) * scale     # fold 1/sqrt(d_head) into bq
    bk = params["bk"].reshape(H)
    bv = params["bv"].reshape(H)
    bqkv = jnp.concatenate([bq, bk, bv]).reshape(1, 3 * H).astype(jnp.float32)

    return {
        "wqkv": wqkv,
        "bqkv": bqkv,
        "wo": params["wo"].astype(compute_dtype),
        "bo": params["bo"].reshape(1, H).astype(jnp.float32),
        "num_heads": num_heads,
        "d_head": d,
        "compute_dtype": compute_dtype,
    }


# --------------------------------- wrapper -----------------------------------

def basic_multihead_attention(x, packed):
    """x: (B, S, H) float32. packed: output of repack_params (done once)."""
    B, S, H = x.shape
    nh = packed["num_heads"]
    d = packed["d_head"]
    cdt = packed["compute_dtype"]

    kernel = functools.partial(_mha_fused_kernel, num_heads=nh, d_head=d,
                               approx_recip=(cdt != jnp.float32))

    return pl.pallas_call(
        kernel,
        out_shape=jax.ShapeDtypeStruct((B, S, H), x.dtype),
        grid=(B,),
        in_specs=[
            pl.BlockSpec((1, S, H), lambda b: (b, 0, 0)),      # x (per batch, f32)
            pl.BlockSpec((H, 3 * H), lambda b: (0, 0)),        # Wq|Wk|Wv (shared)
            pl.BlockSpec((1, 3 * H), lambda b: (0, 0)),        # bq|bk|bv
            pl.BlockSpec((H, H), lambda b: (0, 0)),            # Wo
            pl.BlockSpec((1, H), lambda b: (0, 0)),            # bo
        ],
        out_specs=pl.BlockSpec((1, S, H), lambda b: (b, 0, 0)),
        scratch_shapes=[pltpu.VMEM((S, H), cdt)],              # concat head outputs
        compiler_params=pltpu.CompilerParams(
            dimension_semantics=("parallel",)),                # B>=2 -> both v7x TCs
    )(x, packed["wqkv"], packed["bqkv"], packed["wo"], packed["bo"])


# --------------------------- deterministic params ----------------------------

def init_params(key, hidden_size, num_heads):
    d = hidden_size // num_heads
    ks = jax.random.split(key, 8)
    scale_in = 1.0 / math.sqrt(hidden_size)
    # Per-head Linear weights stored directly as (d_in, d_out) = (H, d).
    return {
        "wq": jax.random.uniform(ks[0], (num_heads, hidden_size, d),
                                 jnp.float32, -scale_in, scale_in),
        "wk": jax.random.uniform(ks[1], (num_heads, hidden_size, d),
                                 jnp.float32, -scale_in, scale_in),
        "wv": jax.random.uniform(ks[2], (num_heads, hidden_size, d),
                                 jnp.float32, -scale_in, scale_in),
        "bq": jax.random.uniform(ks[3], (num_heads, d),
                                 jnp.float32, -scale_in, scale_in),
        "bk": jax.random.uniform(ks[4], (num_heads, d),
                                 jnp.float32, -scale_in, scale_in),
        "bv": jax.random.uniform(ks[5], (num_heads, d),
                                 jnp.float32, -scale_in, scale_in),
        "wo": jax.random.uniform(ks[6], (hidden_size, hidden_size),
                                 jnp.float32, -scale_in, scale_in),
        "bo": jax.random.uniform(ks[7], (hidden_size,),
                                 jnp.float32, -scale_in, scale_in),
    }


# ------------------------------ pure-JAX reference ---------------------------

def reference(x, params, num_heads):
    B, S, H = x.shape
    d = H // num_heads
    outs = []
    for h in range(num_heads):
        q = x @ params["wq"][h] + params["bq"][h]
        k = x @ params["wk"][h] + params["bk"][h]
        v = x @ params["wv"][h] + params["bv"][h]
        s = jnp.einsum("bqd,bkd->bqk", q, k) / math.sqrt(d)
        a = jax.nn.softmax(s, axis=-1)
        outs.append(jnp.einsum("bqk,bkd->bqd", a, v))
    concat = jnp.concatenate(outs, axis=2)
    return concat @ params["wo"] + params["bo"]


if __name__ == "__main__":
    B, S, H, NH = 2, 8, 32, 4

    key = jax.random.PRNGKey(0)
    kx, kp = jax.random.split(key)
    x = jax.random.normal(kx, (B, S, H), dtype=jnp.float32)
    params = init_params(kp, H, NH)

    ref = reference(x, params, NH)

    # f32 compute path (exact reciprocal): tight semantic check vs reference.
    packed_f32 = repack_params(params, NH, compute_dtype=jnp.float32)
    out_f32 = jax.block_until_ready(basic_multihead_attention(x, packed_f32))
    assert out_f32.shape == (B, S, H)
    assert jnp.allclose(out_f32, ref, atol=1e-4, rtol=1e-4), "f32 mismatch vs reference"

    # bf16 MXU fast path (f32 accumulation, approx reciprocal): loose tolerance.
    packed_bf16 = repack_params(params, NH, compute_dtype=jnp.bfloat16)
    out_bf16 = jax.block_until_ready(basic_multihead_attention(x, packed_bf16))
    max_err = jnp.max(jnp.abs(out_bf16 - ref))
    assert max_err < 1e-1, f"bf16 path deviates too much: {max_err}"

    print("KERNEL_OK")
</pallas_src>

<mosaic_0001>
module attributes {stable_mosaic.version = 11 : i64} {
  func.func @_mha_fused_kernel(%arg0: i32, %arg1: memref<1x8x32xf32, #tpu.memory_space<vmem>>, %arg2: memref<32x96xf32, #tpu.memory_space<vmem>>, %arg3: memref<1x96xf32, #tpu.memory_space<vmem>>, %arg4: memref<32x32xf32, #tpu.memory_space<vmem>>, %arg5: memref<1x32xf32, #tpu.memory_space<vmem>>, %arg6: memref<1x8x32xf32, #tpu.memory_space<vmem>>, %arg7: memref<8x32xf32, #tpu.memory_space<vmem>>) attributes {dimension_semantics = [#tpu.dimension_semantics<parallel>], iteration_bounds = array<i64: 2>, scalar_prefetch = 0 : i64, scratch_operands = 1 : i64, tpu.core_type = #tpu.core_type<tc>, window_params = [{transform_indices = @transform_0, window_bounds = array<i64: 1, 8, 32>}, {pipeline_mode = #tpu.pipeline_mode<synchronous>, transform_indices = @transform_1, window_bounds = array<i64: 32, 96>}, {pipeline_mode = #tpu.pipeline_mode<synchronous>, transform_indices = @transform_2, window_bounds = array<i64: 1, 96>}, {pipeline_mode = #tpu.pipeline_mode<synchronous>, transform_indices = @transform_3, window_bounds = array<i64: 32, 32>}, {pipeline_mode = #tpu.pipeline_mode<synchronous>, transform_indices = @transform_4, window_bounds = array<i64: 1, 32>}, {transform_indices = @transform_5, window_bounds = array<i64: 1, 8, 32>}]} {
    %c0 = arith.constant 0 : index
    %c0_0 = arith.constant 0 : index
    %c0_1 = arith.constant 0 : index
    %0 = vector.load %arg1[%c0, %c0_0, %c0_1] : memref<1x8x32xf32, #tpu.memory_space<vmem>>, vector<1x8x32xf32>
    %1 = vector.shape_cast %0 : vector<1x8x32xf32> to vector<8x32xf32>
    %c0_2 = arith.constant 0 : index
    %c0_3 = arith.constant 0 : index
    %2 = vector.load %arg2[%c0_2, %c0_3] : memref<32x96xf32, #tpu.memory_space<vmem>>, vector<32x96xf32>
    %cst = arith.constant dense<0.000000e+00> : vector<8x96xf32>
    %3 = tpu.matmul %1, %2, %cst {dimension_numbers = #tpu.dot_dimension_numbers<[1], [0], [0], [1], [0, 0, 1, 1], [], []>} : vector<8x32xf32>, vector<32x96xf32>, vector<8x96xf32> -> vector<8x96xf32>
    %c0_4 = arith.constant 0 : index
    %c0_5 = arith.constant 0 : index
    %4 = vector.load %arg3[%c0_4, %c0_5] : memref<1x96xf32, #tpu.memory_space<vmem>>, vector<1x96xf32>
    %5 = vector.broadcast %4 : vector<1x96xf32> to vector<8x96xf32>
    %6 = arith.addf %3, %5 : vector<8x96xf32>
    %7 = vector.extract_strided_slice %6 {offsets = [0, 0], sizes = [8, 32], strides = [1, 1]} : vector<8x96xf32> to vector<8x32xf32>
    %8 = vector.extract_strided_slice %6 {offsets = [0, 32], sizes = [8, 32], strides = [1, 1]} : vector<8x96xf32> to vector<8x32xf32>
    %9 = vector.extract_strided_slice %6 {offsets = [0, 64], sizes = [8, 32], strides = [1, 1]} : vector<8x96xf32> to vector<8x32xf32>
    %10 = vector.extract_strided_slice %7 {offsets = [0, 0], sizes = [8, 8], strides = [1, 1]} : vector<8x32xf32> to vector<8x8xf32>
    %11 = vector.extract_strided_slice %8 {offsets = [0, 0], sizes = [8, 8], strides = [1, 1]} : vector<8x32xf32> to vector<8x8xf32>
    %12 = vector.extract_strided_slice %9 {offsets = [0, 0], sizes = [8, 8], strides = [1, 1]} : vector<8x32xf32> to vector<8x8xf32>
    %cst_6 = arith.constant dense<0.000000e+00> : vector<8x8xf32>
    %13 = tpu.matmul %10, %11, %cst_6 {dimension_numbers = #tpu.dot_dimension_numbers<[1], [1], [0], [0], [0, 0, 1, 0], [], []>} : vector<8x8xf32>, vector<8x8xf32>, vector<8x8xf32> -> vector<8x8xf32>
    %cst_7 = arith.constant dense<0xFF800000> : vector<8xf32>
    %14 = vector.multi_reduction <maximumf>, %13, %cst_7 [1] : vector<8x8xf32> to vector<8xf32>
    %15 = vector.shape_cast %14 : vector<8xf32> to vector<8x1xf32>
    %16 = vector.broadcast %15 : vector<8x1xf32> to vector<8x8xf32>
    %17 = arith.subf %13, %16 : vector<8x8xf32>
    %18 = math.exp %17 : vector<8x8xf32>
    %cst_8 = arith.constant dense<0.000000e+00> : vector<8xf32>
    %19 = vector.multi_reduction <add>, %18, %cst_8 [1] : vector<8x8xf32> to vector<8xf32>
    %20 = vector.shape_cast %19 : vector<8xf32> to vector<8x1xf32>
    %cst_9 = arith.constant dense<0.000000e+00> : vector<8x8xf32>
    %21 = tpu.matmul %18, %12, %cst_9 {dimension_numbers = #tpu.dot_dimension_numbers<[1], [0], [0], [1], [0, 0, 1, 1], [], []>} : vector<8x8xf32>, vector<8x8xf32>, vector<8x8xf32> -> vector<8x8xf32>
    %22 = tpu.reciprocal %20 : vector<8x1xf32> -> vector<8x1xf32>
    %23 = vector.broadcast %22 : vector<8x1xf32> to vector<8x8xf32>
    %24 = arith.mulf %21, %23 : vector<8x8xf32>
    %c0_10 = arith.constant 0 : index
    %c0_11 = arith.constant 0 : index
    %25 = vector.load %arg7[%c0_10, %c0_11] : memref<8x32xf32, #tpu.memory_space<vmem>>, vector<8x8xf32>
    tpu.vector_store %arg7[%c0_10, %c0_11], %24 {strides = array<i32>} : memref<8x32xf32, #tpu.memory_space<vmem>>, vector<8x8xf32>,
    %26 = vector.extract_strided_slice %7 {offsets = [0, 8], sizes = [8, 8], strides = [1, 1]} : vector<8x32xf32> to vector<8x8xf32>
    %27 = vector.extract_strided_slice %8 {offsets = [0, 8], sizes = [8, 8], strides = [1, 1]} : vector<8x32xf32> to vector<8x8xf32>
    %28 = vector.extract_strided_slice %9 {offsets = [0, 8], sizes = [8, 8], strides = [1, 1]} : vector<8x32xf32> to vector<8x8xf32>
    %cst_12 = arith.constant dense<0.000000e+00> : vector<8x8xf32>
    %29 = tpu.matmul %26, %27, %cst_12 {dimension_numbers = #tpu.dot_dimension_numbers<[1], [1], [0], [0], [0, 0, 1, 0], [], []>} : vector<8x8xf32>, vector<8x8xf32>, vector<8x8xf32> -> vector<8x8xf32>
    %cst_13 = arith.constant dense<0xFF800000> : vector<8xf32>
    %30 = vector.multi_reduction <maximumf>, %29, %cst_13 [1] : vector<8x8xf32> to vector<8xf32>
    %31 = vector.shape_cast %30 : vector<8xf32> to vector<8x1xf32>
    %32 = vector.broadcast %31 : vector<8x1xf32> to vector<8x8xf32>
    %33 = arith.subf %29, %32 : vector<8x8xf32>
    %34 = math.exp %33 : vector<8x8xf32>
    %cst_14 = arith.constant dense<0.000000e+00> : vector<8xf32>
    %35 = vector.multi_reduction <add>, %34, %cst_14 [1] : vector<8x8xf32> to vector<8xf32>
    %36 = vector.shape_cast %35 : vector<8xf32> to vector<8x1xf32>
    %cst_15 = arith.constant dense<0.000000e+00> : vector<8x8xf32>
    %37 = tpu.matmul %34, %28, %cst_15 {dimension_numbers = #tpu.dot_dimension_numbers<[1], [0], [0], [1], [0, 0, 1, 1], [], []>} : vector<8x8xf32>, vector<8x8xf32>, vector<8x8xf32> -> vector<8x8xf32>
    %38 = tpu.reciprocal %36 : vector<8x1xf32> -> vector<8x1xf32>
    %39 = vector.broadcast %38 : vector<8x1xf32> to vector<8x8xf32>
    %40 = arith.mulf %37, %39 : vector<8x8xf32>
    %c0_16 = arith.constant 0 : index
    %c8 = arith.constant 8 : index
    %41 = vector.load %arg7[%c0_16, %c8] : memref<8x32xf32, #tpu.memory_space<vmem>>, vector<8x8xf32>
    tpu.vector_store %arg7[%c0_16, %c8], %40 {strides = array<i32>} : memref<8x32xf32, #tpu.memory_space<vmem>>, vector<8x8xf32>,
    %42 = vector.extract_strided_slice %7 {offsets = [0, 16], sizes = [8, 8], strides = [1, 1]} : vector<8x32xf32> to vector<8x8xf32>
    %43 = vector.extract_strided_slice %8 {offsets = [0, 16], sizes = [8, 8], strides = [1, 1]} : vector<8x32xf32> to vector<8x8xf32>
    %44 = vector.extract_strided_slice %9 {offsets = [0, 16], sizes = [8, 8], strides = [1, 1]} : vector<8x32xf32> to vector<8x8xf32>
    %cst_17 = arith.constant dense<0.000000e+00> : vector<8x8xf32>
    %45 = tpu.matmul %42, %43, %cst_17 {dimension_numbers = #tpu.dot_dimension_numbers<[1], [1], [0], [0], [0, 0, 1, 0], [], []>} : vector<8x8xf32>, vector<8x8xf32>, vector<8x8xf32> -> vector<8x8xf32>
    %cst_18 = arith.constant dense<0xFF800000> : vector<8xf32>
    %46 = vector.multi_reduction <maximumf>, %45, %cst_18 [1] : vector<8x8xf32> to vector<8xf32>
    %47 = vector.shape_cast %46 : vector<8xf32> to vector<8x1xf32>
    %48 = vector.broadcast %47 : vector<8x1xf32> to vector<8x8xf32>
    %49 = arith.subf %45, %48 : vector<8x8xf32>
    %50 = math.exp %49 : vector<8x8xf32>
    %cst_19 = arith.constant dense<0.000000e+00> : vector<8xf32>
    %51 = vector.multi_reduction <add>, %50, %cst_19 [1] : vector<8x8xf32> to vector<8xf32>
    %52 = vector.shape_cast %51 : vector<8xf32> to vector<8x1xf32>
    %cst_20 = arith.constant dense<0.000000e+00> : vector<8x8xf32>
    %53 = tpu.matmul %50, %44, %cst_20 {dimension_numbers = #tpu.dot_dimension_numbers<[1], [0], [0], [1], [0, 0, 1, 1], [], []>} : vector<8x8xf32>, vector<8x8xf32>, vector<8x8xf32> -> vector<8x8xf32>
    %54 = tpu.reciprocal %52 : vector<8x1xf32> -> vector<8x1xf32>
    %55 = vector.broadcast %54 : vector<8x1xf32> to vector<8x8xf32>
    %56 = arith.mulf %53, %55 : vector<8x8xf32>
    %c0_21 = arith.constant 0 : index
    %c16 = arith.constant 16 : index
    %57 = vector.load %arg7[%c0_21, %c16] : memref<8x32xf32, #tpu.memory_space<vmem>>, vector<8x8xf32>
    tpu.vector_store %arg7[%c0_21, %c16], %56 {strides = array<i32>} : memref<8x32xf32, #tpu.memory_space<vmem>>, vector<8x8xf32>,
    %58 = vector.extract_strided_slice %7 {offsets = [0, 24], sizes = [8, 8], strides = [1, 1]} : vector<8x32xf32> to vector<8x8xf32>
    %59 = vector.extract_strided_slice %8 {offsets = [0, 24], sizes = [8, 8], strides = [1, 1]} : vector<8x32xf32> to vector<8x8xf32>
    %60 = vector.extract_strided_slice %9 {offsets = [0, 24], sizes = [8, 8], strides = [1, 1]} : vector<8x32xf32> to vector<8x8xf32>
    %cst_22 = arith.constant dense<0.000000e+00> : vector<8x8xf32>
    %61 = tpu.matmul %58, %59, %cst_22 {dimension_numbers = #tpu.dot_dimension_numbers<[1], [1], [0], [0], [0, 0, 1, 0], [], []>} : vector<8x8xf32>, vector<8x8xf32>, vector<8x8xf32> -> vector<8x8xf32>
    %cst_23 = arith.constant dense<0xFF800000> : vector<8xf32>
    %62 = vector.multi_reduction <maximumf>, %61, %cst_23 [1] : vector<8x8xf32> to vector<8xf32>
    %63 = vector.shape_cast %62 : vector<8xf32> to vector<8x1xf32>
    %64 = vector.broadcast %63 : vector<8x1xf32> to vector<8x8xf32>
    %65 = arith.subf %61, %64 : vector<8x8xf32>
    %66 = math.exp %65 : vector<8x8xf32>
    %cst_24 = arith.constant dense<0.000000e+00> : vector<8xf32>
    %67 = vector.multi_reduction <add>, %66, %cst_24 [1] : vector<8x8xf32> to vector<8xf32>
    %68 = vector.shape_cast %67 : vector<8xf32> to vector<8x1xf32>
    %cst_25 = arith.constant dense<0.000000e+00> : vector<8x8xf32>
    %69 = tpu.matmul %66, %60, %cst_25 {dimension_numbers = #tpu.dot_dimension_numbers<[1], [0], [0], [1], [0, 0, 1, 1], [], []>} : vector<8x8xf32>, vector<8x8xf32>, vector<8x8xf32> -> vector<8x8xf32>
    %70 = tpu.reciprocal %68 : vector<8x1xf32> -> vector<8x1xf32>
    %71 = vector.broadcast %70 : vector<8x1xf32> to vector<8x8xf32>
    %72 = arith.mulf %69, %71 : vector<8x8xf32>
    %c0_26 = arith.constant 0 : index
    %c24 = arith.constant 24 : index
    %73 = vector.load %arg7[%c0_26, %c24] : memref<8x32xf32, #tpu.memory_space<vmem>>, vector<8x8xf32>
    tpu.vector_store %arg7[%c0_26, %c24], %72 {strides = array<i32>} : memref<8x32xf32, #tpu.memory_space<vmem>>, vector<8x8xf32>,
    %c0_27 = arith.constant 0 : index
    %c0_28 = arith.constant 0 : index
    %74 = vector.load %arg7[%c0_27, %c0_28] : memref<8x32xf32, #tpu.memory_space<vmem>>, vector<8x32xf32>
    %c0_29 = arith.constant 0 : index
    %c0_30 = arith.constant 0 : index
    %75 = vector.load %arg4[%c0_29, %c0_30] : memref<32x32xf32, #tpu.memory_space<vmem>>, vector<32x32xf32>
    %cst_31 = arith.constant dense<0.000000e+00> : vector<8x32xf32>
    %76 = tpu.matmul %74, %75, %cst_31 {dimension_numbers = #tpu.dot_dimension_numbers<[1], [0], [0], [1], [0, 0, 1, 1], [], []>} : vector<8x32xf32>, vector<32x32xf32>, vector<8x32xf32> -> vector<8x32xf32>
    %c0_32 = arith.constant 0 : index
    %c0_33 = arith.constant 0 : index
    %77 = vector.load %arg5[%c0_32, %c0_33] : memref<1x32xf32, #tpu.memory_space<vmem>>, vector<1x32xf32>
    %78 = vector.broadcast %77 : vector<1x32xf32> to vector<8x32xf32>
    %79 = arith.addf %76, %78 : vector<8x32xf32>
    %c0_34 = arith.constant 0 : index
    %c0_35 = arith.constant 0 : index
    %c0_36 = arith.constant 0 : index
    %80 = vector.load %arg6[%c0_34, %c0_35, %c0_36] : memref<1x8x32xf32, #tpu.memory_space<vmem>>, vector<1x8x32xf32>
    %81 = vector.shape_cast %80 : vector<1x8x32xf32> to vector<8x32xf32>
    %82 = vector.shape_cast %79 : vector<8x32xf32> to vector<1x8x32xf32>
    tpu.vector_store %arg6[%c0_34, %c0_35, %c0_36], %82 {strides = array<i32>} : memref<1x8x32xf32, #tpu.memory_space<vmem>>, vector<1x8x32xf32>,
    return
  }
  func.func @transform_0(%arg0: i32) -> (i32, i32, i32) {
    %c0_i32 = arith.constant 0 : i32
    %c0_i32_0 = arith.constant 0 : i32
    %c0_i32_1 = arith.constant 0 : i32
    return %arg0, %c0_i32, %c0_i32_0 : i32, i32, i32
  }
  func.func @transform_1(%arg0: i32) -> (i32, i32) {
    %c0_i32 = arith.constant 0 : i32
    %c0_i32_0 = arith.constant 0 : i32
    %c0_i32_1 = arith.constant 0 : i32
    return %c0_i32, %c0_i32_0 : i32, i32
  }
  func.func @transform_2(%arg0: i32) -> (i32, i32) {
    %c0_i32 = arith.constant 0 : i32
    %c0_i32_0 = arith.constant 0 : i32
    %c0_i32_1 = arith.constant 0 : i32
    return %c0_i32, %c0_i32_0 : i32, i32
  }
  func.func @transform_3(%arg0: i32) -> (i32, i32) {
    %c0_i32 = arith.constant 0 : i32
    %c0_i32_0 = arith.constant 0 : i32
    %c0_i32_1 = arith.constant 0 : i32
    return %c0_i32, %c0_i32_0 : i32, i32
  }
  func.func @transform_4(%arg0: i32) -> (i32, i32) {
    %c0_i32 = arith.constant 0 : i32
    %c0_i32_0 = arith.constant 0 : i32
    %c0_i32_1 = arith.constant 0 : i32
    return %c0_i32, %c0_i32_0 : i32, i32
  }
  func.func @transform_5(%arg0: i32) -> (i32, i32, i32) {
    %c0_i32 = arith.constant 0 : i32
    %c0_i32_0 = arith.constant 0 : i32
    %c0_i32_1 = arith.constant 0 : i32
    return %arg0, %c0_i32, %c0_i32_0 : i32, i32, i32
  }
}

</mosaic_0001>

<llo_original>
// kernel: tpu_custom_call.1
$region0: #{tpu_custom_call.1}
  #allocation0 [shape = 'u32[]', space=smem, size = 0x4, offset = 0x4, fixed_abs, tag = 'smem constant byte address 0x4 - core index']
  #allocation1 [shape = 'u32[144,128]{1,0:T(1,128)}', space=vmem, size = 0x12000, scoped, tag = 'internal scratch']
  #allocation2 [shape = 'f32[8,32]{1,0:T(8,128)}', space=vmem, size = 0x1000, scoped, tag = 'scratch operand']
  %s0 = inlined_call_operand.hbm [shape: f32[2,8,32], index: 0, kind: input, shape index: {}]
  %s1 = inlined_call_operand.hbm [shape: f32[32,96], index: 1, kind: input, shape index: {}]
  %s2 = inlined_call_operand.vmem [shape: f32[1,96], index: 2, kind: input, shape index: {}]
  %s3 = inlined_call_operand.hbm [shape: f32[32,32], index: 3, kind: input, shape index: {}]
  %s4 = inlined_call_operand.vmem [shape: f32[1,32], index: 4, kind: input, shape index: {}]
  %s5 = inlined_call_operand.hbm [shape: f32[2,8,32], index: 5, kind: output, shape index: {}]
  %s6 = sld [smem:[#allocation0]]
  $region65: #{tpu_custom_call.1} parent=0
    _
  %s8 = ssub.s32 1, %s6
  %s9 = scalar_select 0, %s8, %s6
  $region1: #{tpu_custom_call.1} parent=0
    #allocation3 [shape = 'u8[8192]{0}', space=vmem, size = 0x2000, scoped, tag = 'input window, operand 0']
    #allocation4 [shape = 's32[2]{0}', space=sflag, size = 0x8, scoped, tag = 'scoped memory for tpu_custom_call.1']
    #allocation5 [shape = 's32[2]{0}', space=sflag, size = 0x8, scoped, tag = 'scoped memory for tpu_custom_call.1']
    #allocation6 [shape = 'u8[16384]{0}', space=vmem, size = 0x4000, scoped, tag = 'input window, operand 1, single buffered']
    #allocation7 [shape = 's32[1]{0}', space=sflag, size = 0x4, scoped, tag = 'scoped memory for tpu_custom_call.1']
    #allocation8 [shape = 'u8[16384]{0}', space=vmem, size = 0x4000, scoped, tag = 'input window, operand 3, single buffered']
    #allocation9 [shape = 'u8[8192]{0}', space=vmem, size = 0x2000, scoped, tag = 'output window, operand 0']
    %10 = vsyncpa [#allocation4], 0
    %s11 = scalar_lea.sflag [#allocation4], 1
    %12 = vsyncpa %s11, 0
    %13 = vsyncpa [#allocation7], 0
    %14 = vsyncpa [#allocation5], 0
    %s15 = scalar_lea.sflag [#allocation5], 1
    %16 = vsyncpa %s15, 0
    loop: start=0, step=1, limit=4
    $region2: #{tpu_custom_call.1} parent=1 // loop_pre_header
      _
    $region3: #{tpu_custom_call.1} parent=1 // loop_header
      %s18 = sphi 0, %s22
      %p19 = scmp.ge.s32.totalorder %s18, 4
      %s28 = sphi 0, %s30
      %s31 = sphi 0, %s28
      %s32 = sphi 0, %s31
      %s48 = sphi 0, %s32
      %s52 = sphi 0, %s52
      %s54 = sphi 0, %s52
      %s55 = sphi 0, %s54
      %s69 = sphi 0, %s55
      %s73 = sphi 0, %s73
      %s75 = sphi 0, %s73
      %s76 = sphi 0, %s75
      %s90 = sphi 0, %s76
      %s94 = sphi 0, %s94
      %s96 = sphi 0, %s94
      %s97 = sphi 0, %s96
      %s111 = sphi 0, %s97
      %s115 = sphi 0, %s115
      %s117 = sphi 0, %s115
      %s118 = sphi 0, %s117
      %s132 = sphi 0, %s118
      %s138 = sphi 0, %s140
      %s141 = sphi 0, %s138
      %s142 = sphi 0, %s141
      %s158 = sphi 0, %s142
    $region4: #{tpu_custom_call.1} parent=1 // loop_header_branch
      %21 = sbr.rel (%p19) target = $region8
    $region5: #{tpu_custom_call.1} parent=1 // loop_body
      %s23 = ssub.s32 %s18, 1
      %s24 = ssub.s32 %s18, 2
      %s25 = sadd.s32 %s18, 1
      %s26 = ssub.s32 %s18, %s25
      %p27 = scmp.eq.s32.totalorder %s26, 0
      %s29 = sadd.s32 %s28, 1
      %s30 = scalar_select %p27, %s28, %s29
      %p33 = pneg %p27
      %p34 = scmp.eq.s32.totalorder %s18, 1
      %p35 = por %p33, %p34
      %p36 = scmp.ne.s32.totalorder %s28, %s31
      %p37 = scmp.eq.s32.totalorder %s18, 0
      %p38 = por %p36, %p37
      %p39 = scmp.ne.s32.totalorder %s28, %s31
      %p40 = scmp.eq.s32.totalorder %s23, 1
      %p41 = por %p39, %p40
      %p42 = scmp.ne.s32.totalorder %s31, %s32
      %p43 = scmp.eq.s32.totalorder %s23, 0
      %p44 = por %p42, %p43
      %p45 = scmp.ne.s32.totalorder %s31, %s32
      %p46 = scmp.eq.s32.totalorder %s24, 1
      %p47 = por %p45, %p46
      %p49 = scmp.ne.s32.totalorder %s32, %s48
      %p50 = scmp.eq.s32.totalorder %s24, 0
      %p51 = por %p49, %p50
      %s53 = sadd.s32 %s52, 1
      %p56 = scmp.eq.s32.totalorder %s18, 1
      %p57 = scmp.ne.s32.totalorder %s52, %s54
      %p58 = scmp.eq.s32.totalorder %s18, 0
      %p59 = por %p57, %p58
      %p60 = scmp.ne.s32.totalorder %s52, %s54
      %p61 = scmp.eq.s32.totalorder %s23, 1
      %p62 = por %p60, %p61
      %p63 = scmp.ne.s32.totalorder %s54, %s55
      %p64 = scmp.eq.s32.totalorder %s23, 0
      %p65 = por %p63, %p64
      %p66 = scmp.ne.s32.totalorder %s54, %s55
      %p67 = scmp.eq.s32.totalorder %s24, 1
      %p68 = por %p66, %p67
      %p70 = scmp.ne.s32.totalorder %s55, %s69
      %p71 = scmp.eq.s32.totalorder %s24, 0
      %p72 = por %p70, %p71
      %s74 = sadd.s32 %s73, 1
      %p77 = scmp.eq.s32.totalorder %s18, 1
      %p78 = scmp.ne.s32.totalorder %s73, %s75
      %p79 = scmp.eq.s32.totalorder %s18, 0
      %p80 = por %p78, %p79
      %p81 = scmp.ne.s32.totalorder %s73, %s75
      %p82 = scmp.eq.s32.totalorder %s23, 1
      %p83 = por %p81, %p82
      %p84 = scmp.ne.s32.totalorder %s75, %s76
      %p85 = scmp.eq.s32.totalorder %s23, 0
      %p86 = por %p84, %p85
      %p87 = scmp.ne.s32.totalorder %s75, %s76
      %p88 = scmp.eq.s32.totalorder %s24, 1
      %p89 = por %p87, %p88
      %p91 = scmp.ne.s32.totalorder %s76, %s90
      %p92 = scmp.eq.s32.totalorder %s24, 0
      %p93 = por %p91, %p92
      %s95 = sadd.s32 %s94, 1
      %p98 = scmp.eq.s32.totalorder %s18, 1
      %p99 = scmp.ne.s32.totalorder %s94, %s96
      %p100 = scmp.eq.s32.totalorder %s18, 0
      %p101 = por %p99, %p100
      %p102 = scmp.ne.s32.totalorder %s94, %s96
      %p103 = scmp.eq.s32.totalorder %s23, 1
      %p104 = por %p102, %p103
      %p105 = scmp.ne.s32.totalorder %s96, %s97
      %p106 = scmp.eq.s32.totalorder %s23, 0
      %p107 = por %p105, %p106
      %p108 = scmp.ne.s32.totalorder %s96, %s97
      %p109 = scmp.eq.s32.totalorder %s24, 1
      %p110 = por %p108, %p109
      %p112 = scmp.ne.s32.totalorder %s97, %s111
      %p113 = scmp.eq.s32.totalorder %s24, 0
      %p114 = por %p112, %p113
      %s116 = sadd.s32 %s115, 1
      %p119 = scmp.eq.s32.totalorder %s18, 1
      %p120 = scmp.ne.s32.totalorder %s115, %s117
      %p121 = scmp.eq.s32.totalorder %s18, 0
      %p122 = por %p120, %p121
      %p123 = scmp.ne.s32.totalorder %s115, %s117
      %p124 = scmp.eq.s32.totalorder %s23, 1
      %p125 = por %p123, %p124
      %p126 = scmp.ne.s32.totalorder %s117, %s118
      %p127 = scmp.eq.s32.totalorder %s23, 0
      %p128 = por %p126, %p127
      %p129 = scmp.ne.s32.totalorder %s117, %s118
      %p130 = scmp.eq.s32.totalorder %s24, 1
      %p131 = por %p129, %p130
      %p133 = scmp.ne.s32.totalorder %s118, %s132
      %p134 = scmp.eq.s32.totalorder %s24, 0
      %p135 = por %p133, %p134
      %s136 = ssub.s32 %s18, %s25
      %p137 = scmp.eq.s32.totalorder %s136, 0
      %s139 = sadd.s32 %s138, 1
      %s140 = scalar_select %p137, %s138, %s139
      %p143 = pneg %p137
      %p144 = scmp.eq.s32.totalorder %s18, 1
      %p145 = por %p143, %p144
      %p146 = scmp.ne.s32.totalorder %s138, %s141
      %p147 = scmp.eq.s32.totalorder %s18, 0
      %p148 = por %p146, %p147
      %p149 = scmp.ne.s32.totalorder %s138, %s141
      %p150 = scmp.eq.s32.totalorder %s23, 1
      %p151 = por %p149, %p150
      %p152 = scmp.ne.s32.totalorder %s141, %s142
      %p153 = scmp.eq.s32.totalorder %s23, 0
      %p154 = por %p152, %p153
      %p155 = scmp.ne.s32.totalorder %s141, %s142
      %p156 = scmp.eq.s32.totalorder %s24, 1
      %p157 = por %p155, %p156
      %p159 = scmp.ne.s32.totalorder %s142, %s158
      %p160 = scmp.eq.s32.totalorder %s24, 0
      %p161 = por %p159, %p160
      %p162 = scmp.le.s32.totalorder 1, %s18
      %p163 = scmp.lt.s32.totalorder %s18, 3
      %p164 = pnand %p162, %p163
      %p165 = pneg %p164
      // Predicated region
      $region9: #{tpu_custom_call.1} parent=5 // pred_check
        _
      $region10: #{tpu_custom_call.1} parent=5 // pred_check_branch
        %167 = sbr.rel (%p164) target = $region12
      $region11: #{tpu_custom_call.1} parent=5 // pred_region
        %s168 = ssub.s32 %s18, 1
        // Predicated region
        $region13: #{tpu_custom_call.1} parent=11 // pred_check
          %p169 = pneg %p65
        $region14: #{tpu_custom_call.1} parent=11 // pred_check_branch
          %171 = sbr.rel (%p169) target = $region16
        $region15: #{tpu_custom_call.1} parent=11 // pred_region
          %s173 = ssub.s32 512, 512
          %174 = vsyncadd [#allocation7], %s173
          %s175 = sshll.u32 [#allocation6], 4
          %s176 = int_to_ptr.vmem [resolvable:$true] %s175
          %181 = dma.hbm_to_vmem [thread:$0]  %s1, 512, %s176, [#allocation7], 128, 128, 8
        $region16: #{tpu_custom_call.1} parent=11 // pred_fallthru
          _
        // Predicated region
        $region17: #{tpu_custom_call.1} parent=11 // pred_check
          %p182 = pneg %p86
        $region18: #{tpu_custom_call.1} parent=11 // pred_check_branch
          %184 = sbr.rel (%p182) target = $region20
        $region19: #{tpu_custom_call.1} parent=11 // pred_region
          _
        $region20: #{tpu_custom_call.1} parent=11 // pred_fallthru
          _
        // Predicated region
        $region21: #{tpu_custom_call.1} parent=11 // pred_check
          %p185 = pneg %p107
        $region22: #{tpu_custom_call.1} parent=11 // pred_check_branch
          %187 = sbr.rel (%p185) target = $region24
        $region23: #{tpu_custom_call.1} parent=11 // pred_region
          %s189 = ssub.s32 512, 512
          %190 = vsyncadd [#allocation7], %s189
          %s191 = sshll.u32 [#allocation8], 4
          %s192 = int_to_ptr.vmem [resolvable:$true] %s191
          %197 = dma.hbm_to_vmem [thread:$0]  %s3, 512, %s192, [#allocation7], 128, 128, 8
        $region24: #{tpu_custom_call.1} parent=11 // pred_fallthru
          _
        // Predicated region
        $region25: #{tpu_custom_call.1} parent=11 // pred_check
          %p198 = pneg %p128
        $region26: #{tpu_custom_call.1} parent=11 // pred_check_branch
          %200 = sbr.rel (%p198) target = $region28
        $region27: #{tpu_custom_call.1} parent=11 // pred_region
          _
        $region28: #{tpu_custom_call.1} parent=11 // pred_fallthru
          _
      $region12: #{tpu_custom_call.1} parent=5 // pred_fallthru
        _
      %p201 = scmp.lt.s32.totalorder %s18, 2
      // Predicated region
      $region29: #{tpu_custom_call.1} parent=5 // pred_check
        %p202 = pneg %p201
      $region30: #{tpu_custom_call.1} parent=5 // pred_check_branch
        %204 = sbr.rel (%p202) target = $region32
      $region31: #{tpu_custom_call.1} parent=5 // pred_region
        // Predicated region
        $region33: #{tpu_custom_call.1} parent=31 // pred_check
          %p205 = pneg %p38
        $region34: #{tpu_custom_call.1} parent=31 // pred_check_branch
          %207 = sbr.rel (%p205) target = $region36
        $region35: #{tpu_custom_call.1} parent=31 // pred_region
          %s208 = sand.u32 %s28, 1
          %s209 = scalar_lea.sflag [#allocation4], %s208
          %s210 = sand.u32 %s28, 1
          %s211 = smul.addr %s210, 8
          %s212 = scalar_lea.vmem [#allocation3], %s211
          %s214 = ssub.s32 128, 128
          %215 = vsyncadd %s209, %s214
          %s216 = smul.addr %s18, 128
          %s217 = scalar_lea.hbm %s0, %s216
          %s219 = sshll.u32 %s212, 4
          %s220 = int_to_ptr.vmem [resolvable:$true] %s219
          %222 = dma.hbm_to_vmem [thread:$0]  %s217, 128, %s220, %s209
        $region36: #{tpu_custom_call.1} parent=31 // pred_fallthru
          _
      $region32: #{tpu_custom_call.1} parent=5 // pred_fallthru
        _
      %p223 = scmp.le.s32.totalorder 1, %s18
      %p224 = scmp.lt.s32.totalorder %s18, 3
      %p225 = pnand %p223, %p224
      %p226 = pneg %p225
      // Predicated region
      $region37: #{tpu_custom_call.1} parent=5 // pred_check
        _
      $region38: #{tpu_custom_call.1} parent=5 // pred_check_branch
        %228 = sbr.rel (%p225) target = $region40
      $region39: #{tpu_custom_call.1} parent=5 // pred_region
        %s229 = ssub.s32 %s18, 1
        %s230 = sand.u32 %s31, 1
        %s231 = scalar_lea.sflag [#allocation4], %s230
        %s232 = sand.u32 %s31, 1
        %s233 = smul.addr %s232, 8
        %s234 = scalar_lea.vmem [#allocation3], %s233
        // Predicated region
        $region41: #{tpu_custom_call.1} parent=39 // pred_check
          %p235 = pneg %p44
        $region42: #{tpu_custom_call.1} parent=39 // pred_check_branch
          %237 = sbr.rel (%p235) target = $region44
        $region43: #{tpu_custom_call.1} parent=39 // pred_region
          %238 = dma.done %s231, 128
        $region44: #{tpu_custom_call.1} parent=39 // pred_fallthru
          _
        // Predicated region
        $region45: #{tpu_custom_call.1} parent=39 // pred_check
          %p239 = pneg %p65
        $region46: #{tpu_custom_call.1} parent=39 // pred_check_branch
          %241 = sbr.rel (%p239) target = $region48
        $region47: #{tpu_custom_call.1} parent=39 // pred_region
          %242 = dma.done [#allocation7], 512
        $region48: #{tpu_custom_call.1} parent=39 // pred_fallthru
          _
        // Predicated region
        $region49: #{tpu_custom_call.1} parent=39 // pred_check
          %p243 = pneg %p107
        $region50: #{tpu_custom_call.1} parent=39 // pred_check_branch
          %245 = sbr.rel (%p243) target = $region52
        $region51: #{tpu_custom_call.1} parent=39 // pred_region
          %246 = dma.done [#allocation7], 512
        $region52: #{tpu_custom_call.1} parent=39 // pred_fallthru
          _
        %s247 = sand.u32 %s31, 1
        %s248 = scalar_lea.sflag [#allocation4], %s247
        %s249 = sand.u32 %s31, 1
        %s250 = smul.addr %s249, 8
        %s251 = scalar_lea.vmem [#allocation3], %s250
        %p252 = pneg %p44
        %p253 = pneg %p41
        %p254 = pneg %p65
        %p255 = pneg %p62
        %p256 = pneg %p86
        %p257 = pneg %p83
        %p258 = pneg %p107
        %p259 = pneg %p104
        %p260 = pneg %p128
        %p261 = pneg %p125
        %p262 = pneg %p154
        %p263 = pneg %p151
        %s264 = sand.u32 %s141, 1
        %s265 = scalar_lea.sflag [#allocation5], %s264
        %s266 = sand.u32 %s141, 1
        %s267 = smul.addr %s266, 8
        %s268 = scalar_lea.vmem [#allocation9], %s267
        %v269 = vld [vmem:[%s234] sm:$0xff]
        %v270 = vld [vmem:[#allocation6] sm:$0xff]
        %v271 = vld [vmem:[#allocation6 + $0x8] sm:$0xff]
        %v272 = vld [vmem:[#allocation6 + $0x10] sm:$0xff]
        %v273 = vld [vmem:[#allocation6 + $0x18] sm:$0xff]
        %v274 = vld [vmem:[%s2] sm:$0x1]
        %v276 = vlaneseq
        %v277 = vshrl.u32 %v276, 7
        %v278 = vsub.s32 0, %v277
        %v279 = vrot.slane %v274, %v278
        %vm281 = vcmask 261120
        %v283 = vsel %vm281, %v269, 0
        %285 = vmatprep.subr.mxu0 0.0
        %286 = vmatpush1.msra.mxu0 0.0
        %287 = vmatprep.subr.mxu0 0.0
        %288 = vmatpush1.msra.mxu0 0.0
        %289 = vmatprep.subr.mxu0 0.0
        %290 = vmatpush1.msra.mxu0 0.0
        %291 = vmatprep.subr.mxu0 0.0
        %292 = vmatpush1.msra.mxu0 0.0
        %293 = vmatprep.subr.mxu0 0.0
        %294 = vmatpush1.msra.mxu0 0.0
        %295 = vmatprep.subr.mxu0 0.0
        %296 = vmatpush1.msra.mxu0 0.0
        %297 = vmatprep.subr.mxu0 0.0
        %298 = vmatpush1.msra.mxu0 0.0
        %299 = vmatprep.subr.mxu0 0.0
        %300 = vmatpush1.msra.mxu0 0.0
        %301 = vmatprep.subr.mxu0 0.0
        %302 = vmatpush1.msra.mxu0 0.0
        %303 = vmatprep.subr.mxu0 0.0
        %304 = vmatpush1.msra.mxu0 0.0
        %305 = vmatprep.subr.mxu0 0.0
        %306 = vmatpush1.msra.mxu0 0.0
        %307 = vmatprep.subr.mxu0 0.0
        %308 = vmatpush1.msra.mxu0 0.0
        %309 = vmatprep.subr.mxu0 0.0
        %310 = vmatpush1.msra.mxu0 %v273
        %311 = vmatprep.subr.mxu0 0.0
        %312 = vmatpush1.msra.mxu0 %v272
        %313 = vmatprep.subr.mxu0 0.0
        %314 = vmatpush1.msra.mxu0 %v271
        %315 = vmatprep.subr.mxu0 0.0
        %316 = vmatpush1.msra.mxu0 %v270
        %317 = vmatprep.subr.mxu0 0.0
        %318 = vmatpush2.msra.mxu0 0.0
        %319 = vmatprep.subr.mxu0 0.0
        %320 = vmatpush2.msra.mxu0 0.0
        %321 = vmatprep.subr.mxu0 0.0
        %322 = vmatpush2.msra.mxu0 0.0
        %323 = vmatprep.subr.mxu0 0.0
        %324 = vmatpush2.msra.mxu0 0.0
        %325 = vmatprep.subr.mxu0 0.0
        %326 = vmatpush2.msra.mxu0 0.0
        %327 = vmatprep.subr.mxu0 0.0
        %328 = vmatpush2.msra.mxu0 0.0
        %329 = vmatprep.subr.mxu0 0.0
        %330 = vmatpush2.msra.mxu0 0.0
        %331 = vmatprep.subr.mxu0 0.0
        %332 = vmatpush2.msra.mxu0 0.0
        %333 = vmatprep.subr.mxu0 0.0
        %334 = vmatpush2.msra.mxu0 0.0
        %335 = vmatprep.subr.mxu0 0.0
        %336 = vmatpush2.msra.mxu0 0.0
        %337 = vmatprep.subr.mxu0 0.0
        %338 = vmatpush2.msra.mxu0 0.0
        %339 = vmatprep.subr.mxu0 0.0
        %340 = vmatpush2.msra.mxu0 0.0
        %341 = vmatprep.subr.mxu0 0.0
        %342 = vmatpush2.msra.mxu0 0.0
        %343 = vmatprep.subr.mxu0 0.0
        %344 = vmatpush2.msra.mxu0 0.0
        %345 = vmatprep.subr.mxu0 0.0
        %346 = vmatpush2.msra.mxu0 0.0
        %347 = vmatprep.subr.mxu0 0.0
        %348 = vmatpush2.msra.mxu0 0.0
        %349 = vmatprep.mubr.f32.mxu0 0.0
        %350 = vmatmul.mubr.f32.gmra.mxu0 %v283
        %v351 = vpop.f32.mrf.mxu0
        %v352 = vadd.f32 %v279, %v351
        %v353 = vpop.f32.mrf.mxu0
        %354 = vdwg.mxu0
        %356 = vrot.lane.b32.xlu0 %v352, 96
        %v357 = vpop.permute.xlu0 %356
        %vm358 = vcmask 64512
        %v359 = vsel %vm358, %v352, 0
        %v361 = vsel %vm358, %v357, 0
        %363 = vmatprep.subr.mxu0 0.0
        %364 = vmatpush1.xpose.msra.mxu0 0.0
        %365 = vmatprep.subr.mxu0 0.0
        %366 = vmatpush1.xpose.msra.mxu0 0.0
        %367 = vmatprep.subr.mxu0 0.0
        %368 = vmatpush1.xpose.msra.mxu0 0.0
        %369 = vmatprep.subr.mxu0 0.0
        %370 = vmatpush1.xpose.msra.mxu0 0.0
        %371 = vmatprep.subr.mxu0 0.0
        %372 = vmatpush1.xpose.msra.mxu0 0.0
        %373 = vmatprep.subr.mxu0 0.0
        %374 = vmatpush1.xpose.msra.mxu0 0.0
        %375 = vmatprep.subr.mxu0 0.0
        %376 = vmatpush1.xpose.msra.mxu0 0.0
        %377 = vmatprep.subr.mxu0 0.0
        %378 = vmatpush1.xpose.msra.mxu0 0.0
        %379 = vmatprep.subr.mxu0 0.0
        %380 = vmatpush1.xpose.msra.mxu0 0.0
        %381 = vmatprep.subr.mxu0 0.0
        %382 = vmatpush1.xpose.msra.mxu0 0.0
        %383 = vmatprep.subr.mxu0 0.0
        %384 = vmatpush1.xpose.msra.mxu0 0.0
        %385 = vmatprep.subr.mxu0 0.0
        %386 = vmatpush1.xpose.msra.mxu0 0.0
        %387 = vmatprep.subr.mxu0 0.0
        %388 = vmatpush1.xpose.msra.mxu0 0.0
        %389 = vmatprep.subr.mxu0 0.0
        %390 = vmatpush1.xpose.msra.mxu0 0.0
        %391 = vmatprep.subr.mxu0 0.0
        %392 = vmatpush1.xpose.msra.mxu0 0.0
        %393 = vmatprep.subr.mxu0 0.0
        %394 = vmatpush1.xpose.msra.mxu0 %v361
        %395 = vmatprep.subr.mxu0 0.0
        %396 = vmatpush2.xpose.msra.mxu0 0.0
        %397 = vmatprep.subr.mxu0 0.0
        %398 = vmatpush2.xpose.msra.mxu0 0.0
        %399 = vmatprep.subr.mxu0 0.0
        %400 = vmatpush2.xpose.msra.mxu0 0.0
        %401 = vmatprep.subr.mxu0 0.0
        %402 = vmatpush2.xpose.msra.mxu0 0.0
        %403 = vmatprep.subr.mxu0 0.0
        %404 = vmatpush2.xpose.msra.mxu0 0.0
        %405 = vmatprep.subr.mxu0 0.0
        %406 = vmatpush2.xpose.msra.mxu0 0.0
        %407 = vmatprep.subr.mxu0 0.0
        %408 = vmatpush2.xpose.msra.mxu0 0.0
        %409 = vmatprep.subr.mxu0 0.0
        %410 = vmatpush2.xpose.msra.mxu0 0.0
        %411 = vmatprep.subr.mxu0 0.0
        %412 = vmatpush2.xpose.msra.mxu0 0.0
        %413 = vmatprep.subr.mxu0 0.0
        %414 = vmatpush2.xpose.msra.mxu0 0.0
        %415 = vmatprep.subr.mxu0 0.0
        %416 = vmatpush2.xpose.msra.mxu0 0.0
        %417 = vmatprep.subr.mxu0 0.0
        %418 = vmatpush2.xpose.msra.mxu0 0.0
        %419 = vmatprep.subr.mxu0 0.0
        %420 = vmatpush2.xpose.msra.mxu0 0.0
        %421 = vmatprep.subr.mxu0 0.0
        %422 = vmatpush2.xpose.msra.mxu0 0.0
        %423 = vmatprep.subr.mxu0 0.0
        %424 = vmatpush2.xpose.msra.mxu0 0.0
        %425 = vmatprep.subr.mxu0 0.0
        %426 = vmatpush2.xpose.msra.mxu0 0.0
        %427 = vmatprep.mubr.f32.mxu0 0.0
        %428 = vmatmul.mubr.f32.gmra.mxu0 %v359
        %v429 = vpop.f32.mrf.mxu0
        %v430 = vadd.f32 0.0, %v429
        %v431 = vpop.f32.mrf.mxu0
        %432 = vdwg.mxu0
        %v433 = vsel %vm358, %v430, -inf
        %434 = vmax.xlane.f32.xlu0 %v433
        %v435 = vpop.xlane.xlu0 %434
        %v436 = vsub.f32 %v430, %v435
        %v437 = vmul.f32 %v436, 1.442695
        %v438 = vpow.pop %v437
        %v439 = vsel %vm358, %v438, 0.0
        %440 = vadd.xlane.f32.xlu0 %v439
        %v441 = vpop.xlane.xlu0 %440
        %442 = vrot.lane.b32.xlu0 %v352, 64
        %v443 = vpop.permute.xlu0 %442
        %v446 = vsel %vm358, %v438, 0
        %448 = vmatprep.subr.mxu0 0.0
        %449 = vmatpush1.msra.mxu0 0.0
        %450 = vmatprep.subr.mxu0 0.0
        %451 = vmatpush1.msra.mxu0 0.0
        %452 = vmatprep.subr.mxu0 0.0
        %453 = vmatpush1.msra.mxu0 0.0
        %454 = vmatprep.subr.mxu0 0.0
        %455 = vmatpush1.msra.mxu0 0.0
        %456 = vmatprep.subr.mxu0 0.0
        %457 = vmatpush1.msra.mxu0 0.0
        %458 = vmatprep.subr.mxu0 0.0
        %459 = vmatpush1.msra.mxu0 0.0
        %460 = vmatprep.subr.mxu0 0.0
        %461 = vmatpush1.msra.mxu0 0.0
        %462 = vmatprep.subr.mxu0 0.0
        %463 = vmatpush1.msra.mxu0 0.0
        %464 = vmatprep.subr.mxu0 0.0
        %465 = vmatpush1.msra.mxu0 0.0
        %466 = vmatprep.subr.mxu0 0.0
        %467 = vmatpush1.msra.mxu0 0.0
        %468 = vmatprep.subr.mxu0 0.0
        %469 = vmatpush1.msra.mxu0 0.0
        %470 = vmatprep.subr.mxu0 0.0
        %471 = vmatpush1.msra.mxu0 0.0
        %472 = vmatprep.subr.mxu0 0.0
        %473 = vmatpush1.msra.mxu0 0.0
        %474 = vmatprep.subr.mxu0 0.0
        %475 = vmatpush1.msra.mxu0 0.0
        %476 = vmatprep.subr.mxu0 0.0
        %477 = vmatpush1.msra.mxu0 0.0
        %478 = vmatprep.subr.mxu0 0.0
        %479 = vmatpush1.msra.mxu0 %v443
        %480 = vmatprep.subr.mxu0 0.0
        %481 = vmatpush2.msra.mxu0 0.0
        %482 = vmatprep.subr.mxu0 0.0
        %483 = vmatpush2.msra.mxu0 0.0
        %484 = vmatprep.subr.mxu0 0.0
        %485 = vmatpush2.msra.mxu0 0.0
        %486 = vmatprep.subr.mxu0 0.0
        %487 = vmatpush2.msra.mxu0 0.0
        %488 = vmatprep.subr.mxu0 0.0
        %489 = vmatpush2.msra.mxu0 0.0
        %490 = vmatprep.subr.mxu0 0.0
        %491 = vmatpush2.msra.mxu0 0.0
        %492 = vmatprep.subr.mxu0 0.0
        %493 = vmatpush2.msra.mxu0 0.0
        %494 = vmatprep.subr.mxu0 0.0
        %495 = vmatpush2.msra.mxu0 0.0
        %496 = vmatprep.subr.mxu0 0.0
        %497 = vmatpush2.msra.mxu0 0.0
        %498 = vmatprep.subr.mxu0 0.0
        %499 = vmatpush2.msra.mxu0 0.0
        %500 = vmatprep.subr.mxu0 0.0
        %501 = vmatpush2.msra.mxu0 0.0
        %502 = vmatprep.subr.mxu0 0.0
        %503 = vmatpush2.msra.mxu0 0.0
        %504 = vmatprep.subr.mxu0 0.0
        %505 = vmatpush2.msra.mxu0 0.0
        %506 = vmatprep.subr.mxu0 0.0
        %507 = vmatpush2.msra.mxu0 0.0
        %508 = vmatprep.subr.mxu0 0.0
        %509 = vmatpush2.msra.mxu0 0.0
        %510 = vmatprep.subr.mxu0 0.0
        %511 = vmatpush2.msra.mxu0 0.0
        %512 = vmatprep.mubr.f32.mxu0 0.0
        %513 = vmatmul.mubr.f32.gmra.mxu0 %v446
        %v514 = vpop.f32.mrf.mxu0
        %v515 = vadd.f32 0.0, %v514
        %v516 = vpop.f32.mrf.mxu0
        %517 = vdwg.mxu0
        %v518 = vrcp.pop %v441
        %v519 = vmul.f32 %v515, %v518
        %520 = vst.msk [vmem:[#allocation2] sm:$0xff] %vm358, %v519
        %521 = vrot.lane.b32.xlu0 %v352, 120
        %v522 = vpop.permute.xlu0 %521
        %523 = vrot.lane.b32.xlu0 %v352, 88
        %v524 = vpop.permute.xlu0 %523
        %v525 = vsel %vm358, %v522, 0
        %v527 = vsel %vm358, %v524, 0
        %529 = vmatprep.subr.mxu0 0.0
        %530 = vmatpush1.xpose.msra.mxu0 0.0
        %531 = vmatprep.subr.mxu0 0.0
        %532 = vmatpush1.xpose.msra.mxu0 0.0
        %533 = vmatprep.subr.mxu0 0.0
        %534 = vmatpush1.xpose.msra.mxu0 0.0
        %535 = vmatprep.subr.mxu0 0.0
        %536 = vmatpush1.xpose.msra.mxu0 0.0
        %537 = vmatprep.subr.mxu0 0.0
        %538 = vmatpush1.xpose.msra.mxu0 0.0
        %539 = vmatprep.subr.mxu0 0.0
        %540 = vmatpush1.xpose.msra.mxu0 0.0
        %541 = vmatprep.subr.mxu0 0.0
        %542 = vmatpush1.xpose.msra.mxu0 0.0
        %543 = vmatprep.subr.mxu0 0.0
        %544 = vmatpush1.xpose.msra.mxu0 0.0
        %545 = vmatprep.subr.mxu0 0.0
        %546 = vmatpush1.xpose.msra.mxu0 0.0
        %547 = vmatprep.subr.mxu0 0.0
        %548 = vmatpush1.xpose.msra.mxu0 0.0
        %549 = vmatprep.subr.mxu0 0.0
        %550 = vmatpush1.xpose.msra.mxu0 0.0
        %551 = vmatprep.subr.mxu0 0.0
        %552 = vmatpush1.xpose.msra.mxu0 0.0
        %553 = vmatprep.subr.mxu0 0.0
        %554 = vmatpush1.xpose.msra.mxu0 0.0
        %555 = vmatprep.subr.mxu0 0.0
        %556 = vmatpush1.xpose.msra.mxu0 0.0
        %557 = vmatprep.subr.mxu0 0.0
        %558 = vmatpush1.xpose.msra.mxu0 0.0
        %559 = vmatprep.subr.mxu0 0.0
        %560 = vmatpush1.xpose.msra.mxu0 %v527
        %561 = vmatprep.subr.mxu0 0.0
        %562 = vmatpush2.xpose.msra.mxu0 0.0
        %563 = vmatprep.subr.mxu0 0.0
        %564 = vmatpush2.xpose.msra.mxu0 0.0
        %565 = vmatprep.subr.mxu0 0.0
        %566 = vmatpush2.xpose.msra.mxu0 0.0
        %567 = vmatprep.subr.mxu0 0.0
        %568 = vmatpush2.xpose.msra.mxu0 0.0
        %569 = vmatprep.subr.mxu0 0.0
        %570 = vmatpush2.xpose.msra.mxu0 0.0
        %571 = vmatprep.subr.mxu0 0.0
        %572 = vmatpush2.xpose.msra.mxu0 0.0
        %573 = vmatprep.subr.mxu0 0.0
        %574 = vmatpush2.xpose.msra.mxu0 0.0
        %575 = vmatprep.subr.mxu0 0.0
        %576 = vmatpush2.xpose.msra.mxu0 0.0
        %577 = vmatprep.subr.mxu0 0.0
        %578 = vmatpush2.xpose.msra.mxu0 0.0
        %579 = vmatprep.subr.mxu0 0.0
        %580 = vmatpush2.xpose.msra.mxu0 0.0
        %581 = vmatprep.subr.mxu0 0.0
        %582 = vmatpush2.xpose.msra.mxu0 0.0
        %583 = vmatprep.subr.mxu0 0.0
        %584 = vmatpush2.xpose.msra.mxu0 0.0
        %585 = vmatprep.subr.mxu0 0.0
        %586 = vmatpush2.xpose.msra.mxu0 0.0
        %587 = vmatprep.subr.mxu0 0.0
        %588 = vmatpush2.xpose.msra.mxu0 0.0
        %589 = vmatprep.subr.mxu0 0.0
        %590 = vmatpush2.xpose.msra.mxu0 0.0
        %591 = vmatprep.subr.mxu0 0.0
        %592 = vmatpush2.xpose.msra.mxu0 0.0
        %593 = vmatprep.mubr.f32.mxu0 0.0
        %594 = vmatmul.mubr.f32.gmra.mxu0 %v525
        %v595 = vpop.f32.mrf.mxu0
        %v596 = vadd.f32 0.0, %v595
        %v597 = vpop.f32.mrf.mxu0
        %598 = vdwg.mxu0
        %v599 = vsel %vm358, %v596, -inf
        %600 = vmax.xlane.f32.xlu0 %v599
        %v601 = vpop.xlane.xlu0 %600
        %v602 = vsub.f32 %v596, %v601
        %v603 = vmul.f32 %v602, 1.442695
        %v604 = vpow.pop %v603
        %v605 = vsel %vm358, %v604, 0.0
        %606 = vadd.xlane.f32.xlu0 %v605
        %v607 = vpop.xlane.xlu0 %606
        %608 = vrot.lane.b32.xlu0 %v352, 56
        %v609 = vpop.permute.xlu0 %608
        %v612 = vsel %vm358, %v604, 0
        %614 = vmatprep.subr.mxu0 0.0
        %615 = vmatpush1.msra.mxu0 0.0
        %616 = vmatprep.subr.mxu0 0.0
        %617 = vmatpush1.msra.mxu0 0.0
        %618 = vmatprep.subr.mxu0 0.0
        %619 = vmatpush1.msra.mxu0 0.0
        %620 = vmatprep.subr.mxu0 0.0
        %621 = vmatpush1.msra.mxu0 0.0
        %622 = vmatprep.subr.mxu0 0.0
        %623 = vmatpush1.msra.mxu0 0.0
        %624 = vmatprep.subr.mxu0 0.0
        %625 = vmatpush1.msra.mxu0 0.0
        %626 = vmatprep.subr.mxu0 0.0
        %627 = vmatpush1.msra.mxu0 0.0
        %628 = vmatprep.subr.mxu0 0.0
        %629 = vmatpush1.msra.mxu0 0.0
        %630 = vmatprep.subr.mxu0 0.0
        %631 = vmatpush1.msra.mxu0 0.0
        %632 = vmatprep.subr.mxu0 0.0
        %633 = vmatpush1.msra.mxu0 0.0
        %634 = vmatprep.subr.mxu0 0.0
        %635 = vmatpush1.msra.mxu0 0.0
        %636 = vmatprep.subr.mxu0 0.0
        %637 = vmatpush1.msra.mxu0 0.0
        %638 = vmatprep.subr.mxu0 0.0
        %639 = vmatpush1.msra.mxu0 0.0
        %640 = vmatprep.subr.mxu0 0.0
        %641 = vmatpush1.msra.mxu0 0.0
        %642 = vmatprep.subr.mxu0 0.0
        %643 = vmatpush1.msra.mxu0 0.0
        %644 = vmatprep.subr.mxu0 0.0
        %645 = vmatpush1.msra.mxu0 %v609
        %646 = vmatprep.subr.mxu0 0.0
        %647 = vmatpush2.msra.mxu0 0.0
        %648 = vmatprep.subr.mxu0 0.0
        %649 = vmatpush2.msra.mxu0 0.0
        %650 = vmatprep.subr.mxu0 0.0
        %651 = vmatpush2.msra.mxu0 0.0
        %652 = vmatprep.subr.mxu0 0.0
        %653 = vmatpush2.msra.mxu0 0.0
        %654 = vmatprep.subr.mxu0 0.0
        %655 = vmatpush2.msra.mxu0 0.0
        %656 = vmatprep.subr.mxu0 0.0
        %657 = vmatpush2.msra.mxu0 0.0
        %658 = vmatprep.subr.mxu0 0.0
        %659 = vmatpush2.msra.mxu0 0.0
        %660 = vmatprep.subr.mxu0 0.0
        %661 = vmatpush2.msra.mxu0 0.0
        %662 = vmatprep.subr.mxu0 0.0
        %663 = vmatpush2.msra.mxu0 0.0
        %664 = vmatprep.subr.mxu0 0.0
        %665 = vmatpush2.msra.mxu0 0.0
        %666 = vmatprep.subr.mxu0 0.0
        %667 = vmatpush2.msra.mxu0 0.0
        %668 = vmatprep.subr.mxu0 0.0
        %669 = vmatpush2.msra.mxu0 0.0
        %670 = vmatprep.subr.mxu0 0.0
        %671 = vmatpush2.msra.mxu0 0.0
        %672 = vmatprep.subr.mxu0 0.0
        %673 = vmatpush2.msra.mxu0 0.0
        %674 = vmatprep.subr.mxu0 0.0
        %675 = vmatpush2.msra.mxu0 0.0
        %676 = vmatprep.subr.mxu0 0.0
        %677 = vmatpush2.msra.mxu0 0.0
        %678 = vmatprep.mubr.f32.mxu0 0.0
        %679 = vmatmul.mubr.f32.gmra.mxu0 %v612
        %v680 = vpop.f32.mrf.mxu0
        %v681 = vadd.f32 0.0, %v680
        %v682 = vpop.f32.mrf.mxu0
        %683 = vdwg.mxu0
        %v684 = vrcp.pop %v607
        %v685 = vmul.f32 %v681, %v684
        %687 = vrot.lane.b32.xlu0 %v685, 8
        %v688 = vpop.permute.xlu0 %687
        %vm690 = vcmask 130112
        %691 = vst.msk [vmem:[#allocation2] sm:$0xff] %vm690, %v688
        %692 = vrot.lane.b32.xlu0 %v352, 112
        %v693 = vpop.permute.xlu0 %692
        %694 = vrot.lane.b32.xlu0 %v352, 80
        %v695 = vpop.permute.xlu0 %694
        %v696 = vsel %vm358, %v693, 0
        %v698 = vsel %vm358, %v695, 0
        %700 = vmatprep.subr.mxu0 0.0
        %701 = vmatpush1.xpose.msra.mxu0 0.0
        %702 = vmatprep.subr.mxu0 0.0
        %703 = vmatpush1.xpose.msra.mxu0 0.0
        %704 = vmatprep.subr.mxu0 0.0
        %705 = vmatpush1.xpose.msra.mxu0 0.0
        %706 = vmatprep.subr.mxu0 0.0
        %707 = vmatpush1.xpose.msra.mxu0 0.0
        %708 = vmatprep.subr.mxu0 0.0
        %709 = vmatpush1.xpose.msra.mxu0 0.0
        %710 = vmatprep.subr.mxu0 0.0
        %711 = vmatpush1.xpose.msra.mxu0 0.0
        %712 = vmatprep.subr.mxu0 0.0
        %713 = vmatpush1.xpose.msra.mxu0 0.0
        %714 = vmatprep.subr.mxu0 0.0
        %715 = vmatpush1.xpose.msra.mxu0 0.0
        %716 = vmatprep.subr.mxu0 0.0
        %717 = vmatpush1.xpose.msra.mxu0 0.0
        %718 = vmatprep.subr.mxu0 0.0
        %719 = vmatpush1.xpose.msra.mxu0 0.0
        %720 = vmatprep.subr.mxu0 0.0
        %721 = vmatpush1.xpose.msra.mxu0 0.0
        %722 = vmatprep.subr.mxu0 0.0
        %723 = vmatpush1.xpose.msra.mxu0 0.0
        %724 = vmatprep.subr.mxu0 0.0
        %725 = vmatpush1.xpose.msra.mxu0 0.0
        %726 = vmatprep.subr.mxu0 0.0
        %727 = vmatpush1.xpose.msra.mxu0 0.0
        %728 = vmatprep.subr.mxu0 0.0
        %729 = vmatpush1.xpose.msra.mxu0 0.0
        %730 = vmatprep.subr.mxu0 0.0
        %731 = vmatpush1.xpose.msra.mxu0 %v698
        %732 = vmatprep.subr.mxu0 0.0
        %733 = vmatpush2.xpose.msra.mxu0 0.0
        %734 = vmatprep.subr.mxu0 0.0
        %735 = vmatpush2.xpose.msra.mxu0 0.0
        %736 = vmatprep.subr.mxu0 0.0
        %737 = vmatpush2.xpose.msra.mxu0 0.0
        %738 = vmatprep.subr.mxu0 0.0
        %739 = vmatpush2.xpose.msra.mxu0 0.0
        %740 = vmatprep.subr.mxu0 0.0
        %741 = vmatpush2.xpose.msra.mxu0 0.0
        %742 = vmatprep.subr.mxu0 0.0
        %743 = vmatpush2.xpose.msra.mxu0 0.0
        %744 = vmatprep.subr.mxu0 0.0
        %745 = vmatpush2.xpose.msra.mxu0 0.0
        %746 = vmatprep.subr.mxu0 0.0
        %747 = vmatpush2.xpose.msra.mxu0 0.0
        %748 = vmatprep.subr.mxu0 0.0
        %749 = vmatpush2.xpose.msra.mxu0 0.0
        %750 = vmatprep.subr.mxu0 0.0
        %751 = vmatpush2.xpose.msra.mxu0 0.0
        %752 = vmatprep.subr.mxu0 0.0
        %753 = vmatpush2.xpose.msra.mxu0 0.0
        %754 = vmatprep.subr.mxu0 0.0
        %755 = vmatpush2.xpose.msra.mxu0 0.0
        %756 = vmatprep.subr.mxu0 0.0
        %757 = vmatpush2.xpose.msra.mxu0 0.0
        %758 = vmatprep.subr.mxu0 0.0
        %759 = vmatpush2.xpose.msra.mxu0 0.0
        %760 = vmatprep.subr.mxu0 0.0
        %761 = vmatpush2.xpose.msra.mxu0 0.0
        %762 = vmatprep.subr.mxu0 0.0
        %763 = vmatpush2.xpose.msra.mxu0 0.0
        %764 = vmatprep.mubr.f32.mxu0 0.0
        %765 = vmatmul.mubr.f32.gmra.mxu0 %v696
        %v766 = vpop.f32.mrf.mxu0
        %v767 = vadd.f32 0.0, %v766
        %v768 = vpop.f32.mrf.mxu0
        %769 = vdwg.mxu0
        %v770 = vsel %vm358, %v767, -inf
        %771 = vmax.xlane.f32.xlu0 %v770
        %v772 = vpop.xlane.xlu0 %771
        %v773 = vsub.f32 %v767, %v772
        %v774 = vmul.f32 %v773, 1.442695
        %v775 = vpow.pop %v774
        %v776 = vsel %vm358, %v775, 0.0
        %777 = vadd.xlane.f32.xlu0 %v776
        %v778 = vpop.xlane.xlu0 %777
        %779 = vrot.lane.b32.xlu0 %v352, 48
        %v780 = vpop.permute.xlu0 %779
        %v783 = vsel %vm358, %v775, 0
        %785 = vmatprep.subr.mxu0 0.0
        %786 = vmatpush1.msra.mxu0 0.0
        %787 = vmatprep.subr.mxu0 0.0
        %788 = vmatpush1.msra.mxu0 0.0
        %789 = vmatprep.subr.mxu0 0.0
        %790 = vmatpush1.msra.mxu0 0.0
        %791 = vmatprep.subr.mxu0 0.0
        %792 = vmatpush1.msra.mxu0 0.0
        %793 = vmatprep.subr.mxu0 0.0
        %794 = vmatpush1.msra.mxu0 0.0
        %795 = vmatprep.subr.mxu0 0.0
        %796 = vmatpush1.msra.mxu0 0.0
        %797 = vmatprep.subr.mxu0 0.0
        %798 = vmatpush1.msra.mxu0 0.0
        %799 = vmatprep.subr.mxu0 0.0
        %800 = vmatpush1.msra.mxu0 0.0
        %801 = vmatprep.subr.mxu0 0.0
        %802 = vmatpush1.msra.mxu0 0.0
        %803 = vmatprep.subr.mxu0 0.0
        %804 = vmatpush1.msra.mxu0 0.0
        %805 = vmatprep.subr.mxu0 0.0
        %806 = vmatpush1.msra.mxu0 0.0
        %807 = vmatprep.subr.mxu0 0.0
        %808 = vmatpush1.msra.mxu0 0.0
        %809 = vmatprep.subr.mxu0 0.0
        %810 = vmatpush1.msra.mxu0 0.0
        %811 = vmatprep.subr.mxu0 0.0
        %812 = vmatpush1.msra.mxu0 0.0
        %813 = vmatprep.subr.mxu0 0.0
        %814 = vmatpush1.msra.mxu0 0.0
        %815 = vmatprep.subr.mxu0 0.0
        %816 = vmatpush1.msra.mxu0 %v780
        %817 = vmatprep.subr.mxu0 0.0
        %818 = vmatpush2.msra.mxu0 0.0
        %819 = vmatprep.subr.mxu0 0.0
        %820 = vmatpush2.msra.mxu0 0.0
        %821 = vmatprep.subr.mxu0 0.0
        %822 = vmatpush2.msra.mxu0 0.0
        %823 = vmatprep.subr.mxu0 0.0
        %824 = vmatpush2.msra.mxu0 0.0
        %825 = vmatprep.subr.mxu0 0.0
        %826 = vmatpush2.msra.mxu0 0.0
        %827 = vmatprep.subr.mxu0 0.0
        %828 = vmatpush2.msra.mxu0 0.0
        %829 = vmatprep.subr.mxu0 0.0
        %830 = vmatpush2.msra.mxu0 0.0
        %831 = vmatprep.subr.mxu0 0.0
        %832 = vmatpush2.msra.mxu0 0.0
        %833 = vmatprep.subr.mxu0 0.0
        %834 = vmatpush2.msra.mxu0 0.0
        %835 = vmatprep.subr.mxu0 0.0
        %836 = vmatpush2.msra.mxu0 0.0
        %837 = vmatprep.subr.mxu0 0.0
        %838 = vmatpush2.msra.mxu0 0.0
        %839 = vmatprep.subr.mxu0 0.0
        %840 = vmatpush2.msra.mxu0 0.0
        %841 = vmatprep.subr.mxu0 0.0
        %842 = vmatpush2.msra.mxu0 0.0
        %843 = vmatprep.subr.mxu0 0.0
        %844 = vmatpush2.msra.mxu0 0.0
        %845 = vmatprep.subr.mxu0 0.0
        %846 = vmatpush2.msra.mxu0 0.0
        %847 = vmatprep.subr.mxu0 0.0
        %848 = vmatpush2.msra.mxu0 0.0
        %849 = vmatprep.mubr.f32.mxu0 0.0
        %850 = vmatmul.mubr.f32.gmra.mxu0 %v783
        %v851 = vpop.f32.mrf.mxu0
        %v852 = vadd.f32 0.0, %v851
        %v853 = vpop.f32.mrf.mxu0
        %854 = vdwg.mxu0
        %v855 = vrcp.pop %v778
        %v856 = vmul.f32 %v852, %v855
        %858 = vrot.lane.b32.xlu0 %v856, 16
        %v859 = vpop.permute.xlu0 %858
        %vm861 = vcmask 195712
        %862 = vst.msk [vmem:[#allocation2] sm:$0xff] %vm861, %v859
        %863 = vrot.lane.b32.xlu0 %v352, 104
        %v864 = vpop.permute.xlu0 %863
        %865 = vrot.lane.b32.xlu0 %v352, 72
        %v866 = vpop.permute.xlu0 %865
        %v867 = vsel %vm358, %v864, 0
        %v869 = vsel %vm358, %v866, 0
        %871 = vmatprep.subr.mxu0 0.0
        %872 = vmatpush1.xpose.msra.mxu0 0.0
        %873 = vmatprep.subr.mxu0 0.0
        %874 = vmatpush1.xpose.msra.mxu0 0.0
        %875 = vmatprep.subr.mxu0 0.0
        %876 = vmatpush1.xpose.msra.mxu0 0.0
        %877 = vmatprep.subr.mxu0 0.0
        %878 = vmatpush1.xpose.msra.mxu0 0.0
        %879 = vmatprep.subr.mxu0 0.0
        %880 = vmatpush1.xpose.msra.mxu0 0.0
        %881 = vmatprep.subr.mxu0 0.0
        %882 = vmatpush1.xpose.msra.mxu0 0.0
        %883 = vmatprep.subr.mxu0 0.0
        %884 = vmatpush1.xpose.msra.mxu0 0.0
        %885 = vmatprep.subr.mxu0 0.0
        %886 = vmatpush1.xpose.msra.mxu0 0.0
        %887 = vmatprep.subr.mxu0 0.0
        %888 = vmatpush1.xpose.msra.mxu0 0.0
        %889 = vmatprep.subr.mxu0 0.0
        %890 = vmatpush1.xpose.msra.mxu0 0.0
        %891 = vmatprep.subr.mxu0 0.0
        %892 = vmatpush1.xpose.msra.mxu0 0.0
        %893 = vmatprep.subr.mxu0 0.0
        %894 = vmatpush1.xpose.msra.mxu0 0.0
        %895 = vmatprep.subr.mxu0 0.0
        %896 = vmatpush1.xpose.msra.mxu0 0.0
        %897 = vmatprep.subr.mxu0 0.0
        %898 = vmatpush1.xpose.msra.mxu0 0.0
        %899 = vmatprep.subr.mxu0 0.0
        %900 = vmatpush1.xpose.msra.mxu0 0.0
        %901 = vmatprep.subr.mxu0 0.0
        %902 = vmatpush1.xpose.msra.mxu0 %v869
        %903 = vmatprep.subr.mxu0 0.0
        %904 = vmatpush2.xpose.msra.mxu0 0.0
        %905 = vmatprep.subr.mxu0 0.0
        %906 = vmatpush2.xpose.msra.mxu0 0.0
        %907 = vmatprep.subr.mxu0 0.0
        %908 = vmatpush2.xpose.msra.mxu0 0.0
        %909 = vmatprep.subr.mxu0 0.0
        %910 = vmatpush2.xpose.msra.mxu0 0.0
        %911 = vmatprep.subr.mxu0 0.0
        %912 = vmatpush2.xpose.msra.mxu0 0.0
        %913 = vmatprep.subr.mxu0 0.0
        %914 = vmatpush2.xpose.msra.mxu0 0.0
        %915 = vmatprep.subr.mxu0 0.0
        %916 = vmatpush2.xpose.msra.mxu0 0.0
        %917 = vmatprep.subr.mxu0 0.0
        %918 = vmatpush2.xpose.msra.mxu0 0.0
        %919 = vmatprep.subr.mxu0 0.0
        %920 = vmatpush2.xpose.msra.mxu0 0.0
        %921 = vmatprep.subr.mxu0 0.0
        %922 = vmatpush2.xpose.msra.mxu0 0.0
        %923 = vmatprep.subr.mxu0 0.0
        %924 = vmatpush2.xpose.msra.mxu0 0.0
        %925 = vmatprep.subr.mxu0 0.0
        %926 = vmatpush2.xpose.msra.mxu0 0.0
        %927 = vmatprep.subr.mxu0 0.0
        %928 = vmatpush2.xpose.msra.mxu0 0.0
        %929 = vmatprep.subr.mxu0 0.0
        %930 = vmatpush2.xpose.msra.mxu0 0.0
        %931 = vmatprep.subr.mxu0 0.0
        %932 = vmatpush2.xpose.msra.mxu0 0.0
        %933 = vmatprep.subr.mxu0 0.0
        %934 = vmatpush2.xpose.msra.mxu0 0.0
        %935 = vmatprep.mubr.f32.mxu0 0.0
        %936 = vmatmul.mubr.f32.gmra.mxu0 %v867
        %v937 = vpop.f32.mrf.mxu0
        %v938 = vadd.f32 0.0, %v937
        %v939 = vpop.f32.mrf.mxu0
        %940 = vdwg.mxu0
        %v941 = vsel %vm358, %v938, -inf
        %942 = vmax.xlane.f32.xlu0 %v941
        %v943 = vpop.xlane.xlu0 %942
        %v944 = vsub.f32 %v938, %v943
        %v945 = vmul.f32 %v944, 1.442695
        %v946 = vpow.pop %v945
        %v947 = vsel %vm358, %v946, 0.0
        %948 = vadd.xlane.f32.xlu0 %v947
        %v949 = vpop.xlane.xlu0 %948
        %950 = vrot.lane.b32.xlu0 %v352, 40
        %v951 = vpop.permute.xlu0 %950
        %v954 = vsel %vm358, %v946, 0
        %956 = vmatprep.subr.mxu0 0.0
        %957 = vmatpush1.msra.mxu0 0.0
        %958 = vmatprep.subr.mxu0 0.0
        %959 = vmatpush1.msra.mxu0 0.0
        %960 = vmatprep.subr.mxu0 0.0
        %961 = vmatpush1.msra.mxu0 0.0
        %962 = vmatprep.subr.mxu0 0.0
        %963 = vmatpush1.msra.mxu0 0.0
        %964 = vmatprep.subr.mxu0 0.0
        %965 = vmatpush1.msra.mxu0 0.0
        %966 = vmatprep.subr.mxu0 0.0
        %967 = vmatpush1.msra.mxu0 0.0
        %968 = vmatprep.subr.mxu0 0.0
        %969 = vmatpush1.msra.mxu0 0.0
        %970 = vmatprep.subr.mxu0 0.0
        %971 = vmatpush1.msra.mxu0 0.0
        %972 = vmatprep.subr.mxu0 0.0
        %973 = vmatpush1.msra.mxu0 0.0
        %974 = vmatprep.subr.mxu0 0.0
        %975 = vmatpush1.msra.mxu0 0.0
        %976 = vmatprep.subr.mxu0 0.0
        %977 = vmatpush1.msra.mxu0 0.0
        %978 = vmatprep.subr.mxu0 0.0
        %979 = vmatpush1.msra.mxu0 0.0
        %980 = vmatprep.subr.mxu0 0.0
        %981 = vmatpush1.msra.mxu0 0.0
        %982 = vmatprep.subr.mxu0 0.0
        %983 = vmatpush1.msra.mxu0 0.0
        %984 = vmatprep.subr.mxu0 0.0
        %985 = vmatpush1.msra.mxu0 0.0
        %986 = vmatprep.subr.mxu0 0.0
        %987 = vmatpush1.msra.mxu0 %v951
        %988 = vmatprep.subr.mxu0 0.0
        %989 = vmatpush2.msra.mxu0 0.0
        %990 = vmatprep.subr.mxu0 0.0
        %991 = vmatpush2.msra.mxu0 0.0
        %992 = vmatprep.subr.mxu0 0.0
        %993 = vmatpush2.msra.mxu0 0.0
        %994 = vmatprep.subr.mxu0 0.0
        %995 = vmatpush2.msra.mxu0 0.0
        %996 = vmatprep.subr.mxu0 0.0
        %997 = vmatpush2.msra.mxu0 0.0
        %998 = vmatprep.subr.mxu0 0.0
        %999 = vmatpush2.msra.mxu0 0.0
        %1000 = vmatprep.subr.mxu0 0.0
        %1001 = vmatpush2.msra.mxu0 0.0
        %1002 = vmatprep.subr.mxu0 0.0
        %1003 = vmatpush2.msra.mxu0 0.0
        %1004 = vmatprep.subr.mxu0 0.0
        %1005 = vmatpush2.msra.mxu0 0.0
        %1006 = vmatprep.subr.mxu0 0.0
        %1007 = vmatpush2.msra.mxu0 0.0
        %1008 = vmatprep.subr.mxu0 0.0
        %1009 = vmatpush2.msra.mxu0 0.0
        %1010 = vmatprep.subr.mxu0 0.0
        %1011 = vmatpush2.msra.mxu0 0.0
        %1012 = vmatprep.subr.mxu0 0.0
        %1013 = vmatpush2.msra.mxu0 0.0
        %1014 = vmatprep.subr.mxu0 0.0
        %1015 = vmatpush2.msra.mxu0 0.0
        %1016 = vmatprep.subr.mxu0 0.0
        %1017 = vmatpush2.msra.mxu0 0.0
        %1018 = vmatprep.subr.mxu0 0.0
        %1019 = vmatpush2.msra.mxu0 0.0
        %1020 = vmatprep.mubr.f32.mxu0 0.0
        %1021 = vmatmul.mubr.f32.gmra.mxu0 %v954
        %v1022 = vpop.f32.mrf.mxu0
        %v1023 = vadd.f32 0.0, %v1022
        %v1024 = vpop.f32.mrf.mxu0
        %1025 = vdwg.mxu0
        %v1026 = vrcp.pop %v949
        %v1027 = vmul.f32 %v1023, %v1026
        %1029 = vrot.lane.b32.xlu0 %v1027, 24
        %v1030 = vpop.permute.xlu0 %1029
        %vm1032 = vcmask 261312
        %1033 = vst.msk [vmem:[#allocation2] sm:$0xff] %vm1032, %v1030
        %v1034 = vld [vmem:[#allocation2] sm:$0xff]
        %v1035 = vld [vmem:[#allocation8] sm:$0xff]
        %v1036 = vld [vmem:[#allocation8 + $0x8] sm:$0xff]
        %v1037 = vld [vmem:[#allocation8 + $0x10] sm:$0xff]
        %v1038 = vld [vmem:[#allocation8 + $0x18] sm:$0xff]
        %v1039 = vld [vmem:[%s4] sm:$0x1]
        %v1041 = vlaneseq
        %v1042 = vshrl.u32 %v1041, 7
        %v1043 = vsub.s32 0, %v1042
        %v1044 = vrot.slane %v1039, %v1043
        %v1047 = vsel %vm281, %v1034, 0
        %1049 = vmatprep.subr.mxu0 0.0
        %1050 = vmatpush1.msra.mxu0 0.0
        %1051 = vmatprep.subr.mxu0 0.0
        %1052 = vmatpush1.msra.mxu0 0.0
        %1053 = vmatprep.subr.mxu0 0.0
        %1054 = vmatpush1.msra.mxu0 0.0
        %1055 = vmatprep.subr.mxu0 0.0
        %1056 = vmatpush1.msra.mxu0 0.0
        %1057 = vmatprep.subr.mxu0 0.0
        %1058 = vmatpush1.msra.mxu0 0.0
        %1059 = vmatprep.subr.mxu0 0.0
        %1060 = vmatpush1.msra.mxu0 0.0
        %1061 = vmatprep.subr.mxu0 0.0
        %1062 = vmatpush1.msra.mxu0 0.0
        %1063 = vmatprep.subr.mxu0 0.0
        %1064 = vmatpush1.msra.mxu0 0.0
        %1065 = vmatprep.subr.mxu0 0.0
        %1066 = vmatpush1.msra.mxu0 0.0
        %1067 = vmatprep.subr.mxu0 0.0
        %1068 = vmatpush1.msra.mxu0 0.0
        %1069 = vmatprep.subr.mxu0 0.0
        %1070 = vmatpush1.msra.mxu0 0.0
        %1071 = vmatprep.subr.mxu0 0.0
        %1072 = vmatpush1.msra.mxu0 0.0
        %1073 = vmatprep.subr.mxu0 0.0
        %1074 = vmatpush1.msra.mxu0 %v1038
        %1075 = vmatprep.subr.mxu0 0.0
        %1076 = vmatpush1.msra.mxu0 %v1037
        %1077 = vmatprep.subr.mxu0 0.0
        %1078 = vmatpush1.msra.mxu0 %v1036
        %1079 = vmatprep.subr.mxu0 0.0
        %1080 = vmatpush1.msra.mxu0 %v1035
        %1081 = vmatprep.subr.mxu0 0.0
        %1082 = vmatpush2.msra.mxu0 0.0
        %1083 = vmatprep.subr.mxu0 0.0
        %1084 = vmatpush2.msra.mxu0 0.0
        %1085 = vmatprep.subr.mxu0 0.0
        %1086 = vmatpush2.msra.mxu0 0.0
        %1087 = vmatprep.subr.mxu0 0.0
        %1088 = vmatpush2.msra.mxu0 0.0
        %1089 = vmatprep.subr.mxu0 0.0
        %1090 = vmatpush2.msra.mxu0 0.0
        %1091 = vmatprep.subr.mxu0 0.0
        %1092 = vmatpush2.msra.mxu0 0.0
        %1093 = vmatprep.subr.mxu0 0.0
        %1094 = vmatpush2.msra.mxu0 0.0
        %1095 = vmatprep.subr.mxu0 0.0
        %1096 = vmatpush2.msra.mxu0 0.0
        %1097 = vmatprep.subr.mxu0 0.0
        %1098 = vmatpush2.msra.mxu0 0.0
        %1099 = vmatprep.subr.mxu0 0.0
        %1100 = vmatpush2.msra.mxu0 0.0
        %1101 = vmatprep.subr.mxu0 0.0
        %1102 = vmatpush2.msra.mxu0 0.0
        %1103 = vmatprep.subr.mxu0 0.0
        %1104 = vmatpush2.msra.mxu0 0.0
        %1105 = vmatprep.subr.mxu0 0.0
        %1106 = vmatpush2.msra.mxu0 0.0
        %1107 = vmatprep.subr.mxu0 0.0
        %1108 = vmatpush2.msra.mxu0 0.0
        %1109 = vmatprep.subr.mxu0 0.0
        %1110 = vmatpush2.msra.mxu0 0.0
        %1111 = vmatprep.subr.mxu0 0.0
        %1112 = vmatpush2.msra.mxu0 0.0
        %1113 = vmatprep.mubr.f32.mxu0 0.0
        %1114 = vmatmul.mubr.f32.gmra.mxu0 %v1047
        %v1115 = vpop.f32.mrf.mxu0
        %v1116 = vadd.f32 %v1044, %v1115
        %v1117 = vpop.f32.mrf.mxu0
        %1118 = vdwg.mxu0
        %1119 = vst.msk [vmem:[%s268] sm:$0xff] %vm281, %v1116
        %s1120 = sand.u32 %s141, 1
        %s1121 = scalar_lea.sflag [#allocation5], %s1120
        %s1122 = sand.u32 %s141, 1
        %s1123 = smul.addr %s1122, 8
        %s1124 = scalar_lea.vmem [#allocation9], %s1123
        // Predicated region
        $region53: #{tpu_custom_call.1} parent=39 // pred_check
          %p1125 = pneg %p151
        $region54: #{tpu_custom_call.1} parent=39 // pred_check_branch
          %1127 = sbr.rel (%p1125) target = $region56
        $region55: #{tpu_custom_call.1} parent=39 // pred_region
          %s1129 = ssub.s32 128, 128
          %1130 = vsyncadd %s1121, %s1129
          %s1131 = smul.addr %s23, 128
          %s1132 = scalar_lea.hbm %s5, %s1131
          %s1134 = sshll.u32 %s1124, 4
          %s1135 = int_to_ptr.vmem [resolvable:$true] %s1134
          %1137 = dma.vmem_to_hbm [thread:$0]  %s1135, 128, %s1132, %s1121
        $region56: #{tpu_custom_call.1} parent=39 // pred_fallthru
          _
      $region40: #{tpu_custom_call.1} parent=5 // pred_fallthru
        _
      %p1138 = scmp.le.s32.totalorder 2, %s18
      // Predicated region
      $region57: #{tpu_custom_call.1} parent=5 // pred_check
        %p1139 = pneg %p1138
      $region58: #{tpu_custom_call.1} parent=5 // pred_check_branch
        %1141 = sbr.rel (%p1139) target = $region60
      $region59: #{tpu_custom_call.1} parent=5 // pred_region
        %s1142 = ssub.s32 %s18, 2
        // Predicated region
        $region61: #{tpu_custom_call.1} parent=59 // pred_check
          %p1143 = pneg %p157
        $region62: #{tpu_custom_call.1} parent=59 // pred_check_branch
          %1145 = sbr.rel (%p1143) target = $region64
        $region63: #{tpu_custom_call.1} parent=59 // pred_region
          %s1146 = sand.u32 %s142, 1
          %s1147 = scalar_lea.sflag [#allocation5], %s1146
          %s1148 = sand.u32 %s142, 1
          %s1149 = smul.addr %s1148, 8
          %s1150 = scalar_lea.vmem [#allocation9], %s1149
          %1151 = dma.done %s1147, 128
        $region64: #{tpu_custom_call.1} parent=59 // pred_fallthru
          _
      $region60: #{tpu_custom_call.1} parent=5 // pred_fallthru
        _
    $region6: #{tpu_custom_call.1} parent=1 // loop_footer
      %s22 = sadd.s32 1, %s18
    $region7: #{tpu_custom_call.1} parent=1 // loop_footer_branch
      %17 = sbr.rel target = $region3
    $region8: #{tpu_custom_call.1} parent=1 // loop_exit
      _
    %1152 = vsyncpa [#allocation4], 1
    %s1153 = scalar_lea.sflag [#allocation4], 1
    %1154 = vsyncpa %s1153, 1
    %1155 = vsyncpa [#allocation7], 1
    %1156 = vsyncpa [#allocation5], 1
    %s1157 = scalar_lea.sflag [#allocation5], 1
    %1158 = vsyncpa %s1157, 1

</llo_original>
